<compile_context>
chip_gen: v6e
topology: v6e:2x2x1
jax: 0.10.0
libtpu: 0.0.40
codegen_flags: <defaults>
</compile_context>

<pallas_src>
import jax
import jax.numpy as jnp
from jax.experimental import pallas as pl
from jax.experimental.pallas import tpu as pltpu


def _swish_kernel(x_ref, o_ref):
    # Compute in f32 regardless of storage dtype (v5e has no bf16 VPU/EUP);
    # the kernel is HBM-bound, so the upcast is free.
    x = x_ref[...].astype(jnp.float32)
    # Exact sigmoid with a single EUP transcendental per element:
    #   sigmoid(x) = 0.5 * tanh(0.5 * x) + 0.5
    sig = 0.5 * jnp.tanh(0.5 * x) + 0.5
    o_ref[...] = (x * sig).astype(o_ref.dtype)


def _swish_full_block(x_flat):
    """Swish on a short flat vector as a single full-extent (1, n) block."""
    n = x_flat.shape[0]
    x2d = x_flat.reshape(1, n)
    out2d = pl.pallas_call(
        _swish_kernel,
        out_shape=jax.ShapeDtypeStruct((1, n), x_flat.dtype),
        grid=(1,),
        in_specs=[pl.BlockSpec((1, n), lambda i: (0, 0))],
        out_specs=pl.BlockSpec((1, n), lambda i: (0, 0)),
    )(x2d)
    return out2d.reshape(n)


def _swish_lane_dense(x_flat, target_block_bytes, max_lane):
    """Swish on a flat vector whose length is a multiple of 128."""
    n = x_flat.shape[0]
    dtype = x_flat.dtype
    itemsize = jnp.dtype(dtype).itemsize
    # Size blocks by their f32 compute footprint so sub-32-bit inputs don't
    # blow the VMEM budget with upcast temporaries.
    compute_itemsize = max(itemsize, 4)

    # Lane-dense slab width: largest power-of-two multiple of 128 (<= max_lane)
    # that divides n, so the common path needs no padding and stores are
    # unmasked wide vst.
    lane = 128
    while lane * 2 <= max_lane and n % (lane * 2) == 0:
        lane *= 2
    rows = n // lane
    x2d = x_flat.reshape(rows, lane)

    total_bytes = rows * lane * itemsize
    target_rows = max(32, (target_block_bytes // (lane * compute_itemsize)) // 32 * 32)

    if total_bytes <= (1 << 20) or rows < 4 * 32:
        # Tiny tensor: one full-extent block (rows dim equals full array dim,
        # so no (8,128) divisibility requirement applies to it).
        tile_rows = rows
    else:
        # Keep >= ~4 grid steps so DMA/compute/writeback overlap and the
        # "parallel" axis can be sharded across both TCs on v7x.
        tile_rows = min(target_rows, pl.cdiv(rows, 4))
        tile_rows = max(32, (tile_rows // 32) * 32)

    grid = (pl.cdiv(rows, tile_rows),)
    block_bytes = tile_rows * lane * itemsize
    f32_block_bytes = tile_rows * lane * 4
    # Double-buffered in + out blocks, plus f32 upcast temporaries for
    # sub-32-bit inputs, plus headroom.  Cap well below v7x's 64 MiB VMEM.
    extra = 0 if itemsize >= 4 else 2 * f32_block_bytes
    vmem_limit = min(48 * 1024 * 1024,
                     max(16 * 1024 * 1024,
                         4 * block_bytes + extra + 4 * 1024 * 1024))

    out2d = pl.pallas_call(
        _swish_kernel,
        out_shape=jax.ShapeDtypeStruct((rows, lane), dtype),
        grid_spec=pltpu.PrefetchScalarGridSpec(
            num_scalar_prefetch=0,
            grid=grid,
            in_specs=[pl.BlockSpec((tile_rows, lane), lambda i: (i, 0))],
            out_specs=pl.BlockSpec((tile_rows, lane), lambda i: (i, 0)),
        ),
        compiler_params=pltpu.CompilerParams(
            dimension_semantics=("parallel",),   # v7x: shard across both TCs
            vmem_limit_bytes=vmem_limit,
        ),
        cost_estimate=pl.CostEstimate(
            flops=5 * n,
            transcendentals=n,
            bytes_accessed=2 * n * itemsize,
        ),
    )(x2d)
    return out2d.reshape(n)


def swish(x, *, target_block_bytes=8 * 1024 * 1024, max_lane=4096):
    """Elementwise Swish (x * sigmoid(x)) for any shape / float dtype."""
    orig_shape = x.shape
    n = x.size
    if n == 0:
        return x
    x_flat = jnp.ravel(x)

    if n % 128 == 0:
        out_flat = _swish_lane_dense(x_flat, target_block_bytes, max_lane)
    elif n < 128:
        out_flat = _swish_full_block(x_flat)
    else:
        # Ragged: lane-aligned prefix through the tiled kernel, tiny (<128)
        # tail through a full-extent block.  No jnp.pad / full-tensor slice.
        n_main = (n // 128) * 128
        main = _swish_lane_dense(x_flat[:n_main], target_block_bytes, max_lane)
        tail = _swish_full_block(x_flat[n_main:])
        out_flat = jnp.concatenate([main, tail])

    return out_flat.reshape(orig_shape)


if __name__ == "__main__":
    key = jax.random.PRNGKey(0)
    # NCHW input, like the PyTorch module would receive.
    x = jax.random.normal(key, (2, 4, 16, 16), dtype=jnp.float32)

    out = swish(x)
    jax.block_until_ready(out)

    ref = x * jax.nn.sigmoid(x)
    assert out.shape == x.shape and out.dtype == x.dtype
    assert jnp.allclose(out, ref, atol=1e-4, rtol=1e-4), float(
        jnp.max(jnp.abs(out - ref)))

    # Ragged shape smaller than one lane (full-extent-block path).
    x2 = jax.random.normal(jax.random.PRNGKey(1), (3, 5, 7), dtype=jnp.float32)
    out2 = swish(x2)
    jax.block_until_ready(out2)
    ref2 = x2 * jax.nn.sigmoid(x2)
    assert jnp.allclose(out2, ref2, atol=1e-4, rtol=1e-4)

    # Ragged shape larger than one lane (prefix + tail path).
    x3 = jax.random.normal(jax.random.PRNGKey(2), (3, 50), dtype=jnp.float32)
    out3 = swish(x3)
    jax.block_until_ready(out3)
    ref3 = x3 * jax.nn.sigmoid(x3)
    assert jnp.allclose(out3, ref3, atol=1e-4, rtol=1e-4)

    print("KERNEL_OK")
</pallas_src>

<mosaic_0001>
module attributes {stable_mosaic.version = 11 : i64} {
  func.func @_swish_kernel(%arg0: i32, %arg1: memref<1x2048xf32, #tpu.memory_space<vmem>>, %arg2: memref<1x2048xf32, #tpu.memory_space<vmem>>) attributes {dimension_semantics = [#tpu.dimension_semantics<parallel>], iteration_bounds = array<i64: 1>, scalar_prefetch = 0 : i64, scratch_operands = 0 : i64, tpu.core_type = #tpu.core_type<tc>, window_params = [{transform_indices = @transform_0, window_bounds = array<i64: 1, 2048>}, {transform_indices = @transform_1, window_bounds = array<i64: 1, 2048>}]} {
    %c0 = arith.constant 0 : index
    %c0_0 = arith.constant 0 : index
    %0 = vector.load %arg1[%c0, %c0_0] : memref<1x2048xf32, #tpu.memory_space<vmem>>, vector<1x2048xf32>
    %cst = arith.constant 5.000000e-01 : f32
    %1 = vector.broadcast %cst : f32 to vector<1x2048xf32>
    %2 = arith.mulf %1, %0 : vector<1x2048xf32>
    %3 = math.tanh %2 : vector<1x2048xf32>
    %cst_1 = arith.constant 5.000000e-01 : f32
    %4 = vector.broadcast %cst_1 : f32 to vector<1x2048xf32>
    %5 = arith.mulf %4, %3 : vector<1x2048xf32>
    %cst_2 = arith.constant 5.000000e-01 : f32
    %6 = vector.broadcast %cst_2 : f32 to vector<1x2048xf32>
    %7 = arith.addf %5, %6 : vector<1x2048xf32>
    %8 = arith.mulf %0, %7 : vector<1x2048xf32>
    %c0_3 = arith.constant 0 : index
    %c0_4 = arith.constant 0 : index
    %9 = vector.load %arg2[%c0_3, %c0_4] : memref<1x2048xf32, #tpu.memory_space<vmem>>, vector<1x2048xf32>
    tpu.vector_store %arg2[%c0_3, %c0_4], %8 {strides = array<i32>} : memref<1x2048xf32, #tpu.memory_space<vmem>>, vector<1x2048xf32>,
    return
  }
  func.func @transform_0(%arg0: i32) -> (i32, i32) {
    %c0_i32 = arith.constant 0 : i32
    %c0_i32_0 = arith.constant 0 : i32
    return %arg0, %c0_i32 : i32, i32
  }
  func.func @transform_1(%arg0: i32) -> (i32, i32) {
    %c0_i32 = arith.constant 0 : i32
    %c0_i32_0 = arith.constant 0 : i32
    return %arg0, %c0_i32 : i32, i32
  }
}

</mosaic_0001>

<llo_original>
// kernel: tpu_custom_call.1
$region0: #{tpu_custom_call.1}
  #allocation0 [shape = 'u32[]', space=smem, size = 0x4, offset = 0x4, fixed_abs, tag = 'smem constant byte address 0x4 - core index']
  #allocation1 [shape = 'u32[144,128]{1,0:T(1,128)}', space=vmem, size = 0x12000, scoped, tag = 'internal scratch']
  %s0 = inlined_call_operand.hbm [shape: f32[1,2048], index: 0, kind: input, shape index: {}]
  %s1 = inlined_call_operand.hbm [shape: f32[1,2048], index: 1, kind: output, shape index: {}]
  %s2 = sld [smem:[#allocation0]]
  $region18: #{tpu_custom_call.1} parent=0
    _
  %s4 = ssub.s32 1, %s2
  %s5 = scalar_select 0, %s4, %s2
  $region1: #{tpu_custom_call.1} parent=0
    #allocation2 [shape = 'u8[8192]{0}', space=vmem, size = 0x2000, scoped, tag = 'input window, operand 0, single buffered']
    #allocation3 [shape = 's32[1]{0}', space=sflag, size = 0x4, scoped, tag = 'scoped memory for tpu_custom_call.1']
    #allocation4 [shape = 's32[1]{0}', space=sflag, size = 0x4, scoped, tag = 'scoped memory for tpu_custom_call.1']
    #allocation5 [shape = 'u8[8192]{0}', space=vmem, size = 0x2000, scoped, tag = 'output window, operand 0, single buffered']
    %6 = vsyncpa [#allocation3], 0
    %7 = vsyncpa [#allocation4], 0
    // Predicated region
    $region2: #{tpu_custom_call.1} parent=1 // pred_check
      _
    $region3: #{tpu_custom_call.1} parent=1 // pred_check_branch
      %9 = sbr.rel (0) target = $region5
    $region4: #{tpu_custom_call.1} parent=1 // pred_region
      %s11 = ssub.s32 256, 256
      %12 = vsyncadd [#allocation3], %s11
      %s14 = sshll.u32 [#allocation2], 4
      %s15 = int_to_ptr.vmem [resolvable:$true] %s14
      %17 = dma.hbm_to_vmem [thread:$0]  %s0, 256, %s15, [#allocation3]
    $region5: #{tpu_custom_call.1} parent=1 // pred_fallthru
      _
    // Predicated region
    $region6: #{tpu_custom_call.1} parent=1 // pred_check
      _
    $region7: #{tpu_custom_call.1} parent=1 // pred_check_branch
      %19 = sbr.rel (0) target = $region9
    $region8: #{tpu_custom_call.1} parent=1 // pred_region
      %20 = dma.done [#allocation3], 256
    $region9: #{tpu_custom_call.1} parent=1 // pred_fallthru
      _
    %v21 = vld [vmem:[#allocation2] sm:$0xff]
    %v22 = vld [vmem:[#allocation2 + $0x8] sm:$0xff]
    %v23 = vmul.f32 %v21, 0.5
    %v24 = vmul.f32 %v22, 0.5
    %v25 = vtanh.pop %v23
    %v26 = vtanh.pop %v24
    %v27 = vmul.f32 %v25, 0.5
    %v28 = vmul.f32 %v26, 0.5
    %v29 = vadd.f32 %v27, 0.5
    %v30 = vadd.f32 %v28, 0.5
    %v31 = vmul.f32 %v21, %v29
    %v32 = vmul.f32 %v22, %v30
    %33 = vst [vmem:[#allocation5] sm:$0xff] %v31
    %34 = vst [vmem:[#allocation5 + $0x8] sm:$0xff] %v32
    // Predicated region
    $region10: #{tpu_custom_call.1} parent=1 // pred_check
      _
    $region11: #{tpu_custom_call.1} parent=1 // pred_check_branch
      %36 = sbr.rel (0) target = $region13
    $region12: #{tpu_custom_call.1} parent=1 // pred_region
      %s38 = ssub.s32 256, 256
      %39 = vsyncadd [#allocation4], %s38
      %s41 = sshll.u32 [#allocation5], 4
      %s42 = int_to_ptr.vmem [resolvable:$true] %s41
      %44 = dma.vmem_to_hbm [thread:$0]  %s42, 256, %s1, [#allocation4]
    $region13: #{tpu_custom_call.1} parent=1 // pred_fallthru
      _
    // Predicated region
    $region14: #{tpu_custom_call.1} parent=1 // pred_check
      _
    $region15: #{tpu_custom_call.1} parent=1 // pred_check_branch
      %46 = sbr.rel (0) target = $region17
    $region16: #{tpu_custom_call.1} parent=1 // pred_region
      %47 = dma.done [#allocation4], 256
    $region17: #{tpu_custom_call.1} parent=1 // pred_fallthru
      _
    %48 = vsyncpa [#allocation3], 1
    %49 = vsyncpa [#allocation4], 1

</llo_original>
